<compile_context>
chip_gen: v5e
topology: v5e:2x2
jax: 0.10.0
libtpu: 0.0.40
codegen_flags: <defaults>
</compile_context>

<pallas_src>
import jax
import jax.numpy as jnp
from jax.experimental import pallas as pl
from jax.experimental.pallas import tpu as pltpu

LANE = 128          # vreg lane width (last dim)
SUBLANE_BF16 = 16   # one bf16 vreg is (16, 128); keep batch tiles multiples of 16


def _round_up(n, m):
    return ((n + m - 1) // m) * m


def mlp_kernel(x_ref, w1_ref, b1_ref, w2_ref, b2_ref, w3_ref, b3_ref, o_ref):
    # x arrives f32 and is cast to the weights' compute dtype on the VPU
    # (free filler in this HBM-bound kernel); all matmuls accumulate in f32.
    x = x_ref[...].astype(w1_ref.dtype)
    # fc1 + relu (bias/ReLU in f32 on the VPU, back to compute dtype for the MXU)
    h1 = jnp.dot(x, w1_ref[...], preferred_element_type=jnp.float32)
    h1 = jnp.maximum(h1 + b1_ref[...], 0.0).astype(w2_ref.dtype)
    # fc2 + relu
    h2 = jnp.dot(h1, w2_ref[...], preferred_element_type=jnp.float32)
    h2 = jnp.maximum(h2 + b2_ref[...], 0.0).astype(w3_ref.dtype)
    # fc3 (no activation) -> unpadded f32 store
    out = jnp.dot(h2, w3_ref[...], preferred_element_type=jnp.float32)
    o_ref[...] = (out + b3_ref[...]).astype(o_ref.dtype)
    # TODO(synk): if hidden/input dims grow beyond VMEM, add a K grid axis with a
    # pl.when-initialized f32 accumulator scratch (axis marked "arbitrary") and
    # pipeline_mode=pl.Buffered(1) on the then-large resident weight specs.


def prepare_params(params, compute_dtype=jnp.bfloat16):
    """One-time (init-time) weight prep: pad hidden dims to 128 lanes and cast
    weights to the explicit compute dtype.  Input/output feature dims stay at
    their natural sizes so the streamed x / out arrays carry no padding.
    Zero padding of hidden columns/rows is exact for Linear+ReLU."""
    w1, b1 = params["w1"], params["b1"]
    w2, b2 = params["w2"], params["b2"]
    w3, b3 = params["w3"], params["b3"]
    in_dim, h1_dim = w1.shape
    h2_dim = w2.shape[1]
    h1_p = _round_up(h1_dim, LANE)
    h2_p = _round_up(h2_dim, LANE)

    def pad_to(a, rows, cols, dtype):
        return jnp.pad(a.astype(dtype),
                       ((0, rows - a.shape[0]), (0, cols - a.shape[1])))

    return {
        "w1": pad_to(w1, in_dim, h1_p, compute_dtype),
        "b1": pad_to(b1, 1, h1_p, jnp.float32),
        "w2": pad_to(w2, h1_p, h2_p, compute_dtype),
        "b2": pad_to(b2, 1, h2_p, jnp.float32),
        "w3": pad_to(w3, h2_p, w3.shape[1], compute_dtype),
        "b3": b3.astype(jnp.float32),
    }


def _choose_tb(B, tb_max=512, target_steps=8):
    """Batch tile: multiple of 16 rows (bf16 sublane packing).  Large batches
    get ~target_steps grid steps (>=2 so the 'parallel' axis can shard across
    v7x's two TensorCores and double-buffering has work to overlap).  Tiny
    batches get a single full-extent block (no padding, no post-call slice)."""
    tb_max = max(SUBLANE_BF16, (tb_max // SUBLANE_BF16) * SUBLANE_BF16)
    tb = min(tb_max, _round_up(pl.cdiv(B, target_steps), SUBLANE_BF16))
    if tb >= B:
        return B, B                      # single full-extent block
    return tb, _round_up(B, tb)


def simple_nn_forward(x, prepared, tb_max=512):
    """x: (B, in_dim) float32, unpadded.  prepared: output of prepare_params."""
    w1, b1 = prepared["w1"], prepared["b1"]
    w2, b2 = prepared["w2"], prepared["b2"]
    w3, b3 = prepared["w3"], prepared["b3"]
    B, in_dim = x.shape
    h1_p, h2_p, out_dim = w1.shape[1], w2.shape[1], w3.shape[1]

    TB, Bp = _choose_tb(B, tb_max)
    if Bp != B:
        x = jnp.pad(x, ((0, Bp - B), (0, 0)))   # fused pad; garbage rows sliced below

    grid = (Bp // TB,)
    const = lambda a: pl.BlockSpec(a.shape, lambda i: (0, 0))   # VMEM-resident

    def nbytes(a):
        return int(a.size) * a.dtype.itemsize

    resident_bytes = sum(nbytes(a) for a in (w1, b1, w2, b2, w3, b3))
    bytes_accessed = nbytes(x) + resident_bytes + Bp * out_dim * 4
    flops = 2 * Bp * (in_dim * h1_p + h1_p * h2_p + h2_p * out_dim)

    # Explicit VMEM budget: double-buffered x/out tiles + (conservatively
    # double-buffered) resident weights + f32 intermediates + slack.  Kept
    # honest against v7x (64 MiB physical / 32 MiB default scoped limit).
    vmem_bytes = (2 * TB * in_dim * 4 + 2 * TB * out_dim * 4
                  + 2 * resident_bytes + 6 * TB * max(h1_p, h2_p) * 4 + (2 << 20))
    vmem_bytes = int(min(max(vmem_bytes, 16 << 20), 48 << 20))

    out = pl.pallas_call(
        mlp_kernel,
        out_shape=jax.ShapeDtypeStruct((Bp, out_dim), jnp.float32),
        grid=grid,
        in_specs=[
            pl.BlockSpec((TB, in_dim), lambda i: (i, 0)),   # x tile: streamed, unpadded
            const(w1), const(b1),                           # weights/biases: resident
            const(w2), const(b2),
            const(w3), const(b3),
        ],
        out_specs=pl.BlockSpec((TB, out_dim), lambda i: (i, 0)),  # unpadded lanes
        compiler_params=pltpu.CompilerParams(
            dimension_semantics=("parallel",),   # megacore sharding on v7x
            vmem_limit_bytes=vmem_bytes,
        ),
        cost_estimate=pl.CostEstimate(
            flops=int(flops), transcendentals=0, bytes_accessed=int(bytes_accessed)),
    )(x, w1, b1, w2, b2, w3, b3)

    return out if Bp == B else out[:B]


def init_params(key, input_dim, hidden_dim, output_dim):
    """Deterministic init matching the PyTorch module's shapes.
    fc1: input_dim -> hidden_dim*2, fc2: hidden_dim*2 -> hidden_dim,
    fc3: hidden_dim -> output_dim.  Weights stored as (in, out)."""
    ks = jax.random.split(key, 6)
    h2d = hidden_dim * 2

    def uniform_init(k, shape, fan_in):
        bound = 1.0 / (fan_in ** 0.5)
        return jax.random.uniform(k, shape, jnp.float32, -bound, bound)

    return {
        "w1": uniform_init(ks[0], (input_dim, h2d), input_dim),
        "b1": uniform_init(ks[1], (1, h2d), input_dim),
        "w2": uniform_init(ks[2], (h2d, hidden_dim), h2d),
        "b2": uniform_init(ks[3], (1, hidden_dim), h2d),
        "w3": uniform_init(ks[4], (hidden_dim, output_dim), hidden_dim),
        "b3": uniform_init(ks[5], (1, output_dim), hidden_dim),
    }


def reference_forward_f32(x, p):
    h1 = jnp.maximum(x @ p["w1"] + p["b1"], 0.0)
    h2 = jnp.maximum(h1 @ p["w2"] + p["b2"], 0.0)
    return h2 @ p["w3"] + p["b3"]


def reference_forward_bf16(x, p):
    """Same bf16-in / f32-accumulate recipe as the kernel."""
    bf = lambda a: a.astype(jnp.bfloat16)
    h1 = jnp.dot(bf(x), bf(p["w1"]), preferred_element_type=jnp.float32) + p["b1"]
    h1 = jnp.maximum(h1, 0.0)
    h2 = jnp.dot(bf(h1), bf(p["w2"]), preferred_element_type=jnp.float32) + p["b2"]
    h2 = jnp.maximum(h2, 0.0)
    return jnp.dot(bf(h2), bf(p["w3"]), preferred_element_type=jnp.float32) + p["b3"]


if __name__ == "__main__":
    key = jax.random.PRNGKey(0)
    k_x, k_p = jax.random.split(key)

    batch, input_dim, hidden_dim, output_dim = 8, 32, 32, 16
    x = jax.random.normal(k_x, (batch, input_dim), jnp.float32)
    params = init_params(k_p, input_dim, hidden_dim, output_dim)

    prepared = prepare_params(params)      # one-time weight prep, hoisted out of forward
    out = simple_nn_forward(x, prepared)
    out = jax.block_until_ready(out)

    assert out.shape == (batch, output_dim)
    # Tight check against a reference using the same bf16/f32 recipe.
    ref_bf16 = reference_forward_bf16(x, params)
    assert jnp.allclose(out, ref_bf16, atol=1e-2, rtol=1e-2), "mismatch vs bf16 reference"
    # Loose check against the pure-f32 PyTorch-equivalent math.
    ref_f32 = reference_forward_f32(x, params)
    assert jnp.allclose(out, ref_f32, atol=1e-1, rtol=1e-1), "mismatch vs f32 reference"

    print("KERNEL_OK")
</pallas_src>

<mosaic_0001>
module attributes {stable_mosaic.version = 11 : i64} {
  func.func @mlp_kernel(%arg0: i32, %arg1: memref<8x32xf32, #tpu.memory_space<vmem>>, %arg2: memref<32x128xbf16, #tpu.memory_space<vmem>>, %arg3: memref<1x128xf32, #tpu.memory_space<vmem>>, %arg4: memref<128x128xbf16, #tpu.memory_space<vmem>>, %arg5: memref<1x128xf32, #tpu.memory_space<vmem>>, %arg6: memref<128x16xbf16, #tpu.memory_space<vmem>>, %arg7: memref<1x16xf32, #tpu.memory_space<vmem>>, %arg8: memref<8x16xf32, #tpu.memory_space<vmem>>) attributes {dimension_semantics = [#tpu.dimension_semantics<parallel>], iteration_bounds = array<i64: 1>, scalar_prefetch = 0 : i64, scratch_operands = 0 : i64, tpu.core_type = #tpu.core_type<tc>, window_params = [{transform_indices = @transform_0, window_bounds = array<i64: 8, 32>}, {pipeline_mode = #tpu.pipeline_mode<synchronous>, transform_indices = @transform_1, window_bounds = array<i64: 32, 128>}, {pipeline_mode = #tpu.pipeline_mode<synchronous>, transform_indices = @transform_2, window_bounds = array<i64: 1, 128>}, {pipeline_mode = #tpu.pipeline_mode<synchronous>, transform_indices = @transform_3, window_bounds = array<i64: 128, 128>}, {pipeline_mode = #tpu.pipeline_mode<synchronous>, transform_indices = @transform_4, window_bounds = array<i64: 1, 128>}, {pipeline_mode = #tpu.pipeline_mode<synchronous>, transform_indices = @transform_5, window_bounds = array<i64: 128, 16>}, {pipeline_mode = #tpu.pipeline_mode<synchronous>, transform_indices = @transform_6, window_bounds = array<i64: 1, 16>}, {transform_indices = @transform_7, window_bounds = array<i64: 8, 16>}]} {
    %c0 = arith.constant 0 : index
    %c0_0 = arith.constant 0 : index
    %0 = vector.load %arg1[%c0, %c0_0] : memref<8x32xf32, #tpu.memory_space<vmem>>, vector<8x32xf32>
    %1 = arith.truncf %0 : vector<8x32xf32> to vector<8x32xbf16>
    %c0_1 = arith.constant 0 : index
    %c0_2 = arith.constant 0 : index
    %2 = vector.load %arg2[%c0_1, %c0_2] : memref<32x128xbf16, #tpu.memory_space<vmem>>, vector<32x128xbf16>
    %cst = arith.constant dense<0.000000e+00> : vector<8x128xf32>
    %3 = tpu.matmul %1, %2, %cst {dimension_numbers = #tpu.dot_dimension_numbers<[1], [0], [0], [1], [0, 0, 1, 1], [], []>} : vector<8x32xbf16>, vector<32x128xbf16>, vector<8x128xf32> -> vector<8x128xf32>
    %c0_3 = arith.constant 0 : index
    %c0_4 = arith.constant 0 : index
    %4 = vector.load %arg3[%c0_3, %c0_4] : memref<1x128xf32, #tpu.memory_space<vmem>>, vector<1x128xf32>
    %5 = vector.broadcast %4 : vector<1x128xf32> to vector<8x128xf32>
    %6 = arith.addf %3, %5 : vector<8x128xf32>
    %cst_5 = arith.constant 0.000000e+00 : f32
    %7 = vector.broadcast %cst_5 : f32 to vector<8x128xf32>
    %8 = arith.maximumf %6, %7 : vector<8x128xf32>
    %9 = arith.truncf %8 : vector<8x128xf32> to vector<8x128xbf16>
    %c0_6 = arith.constant 0 : index
    %c0_7 = arith.constant 0 : index
    %10 = vector.load %arg4[%c0_6, %c0_7] : memref<128x128xbf16, #tpu.memory_space<vmem>>, vector<128x128xbf16>
    %cst_8 = arith.constant dense<0.000000e+00> : vector<8x128xf32>
    %11 = tpu.matmul %9, %10, %cst_8 {dimension_numbers = #tpu.dot_dimension_numbers<[1], [0], [0], [1], [0, 0, 1, 1], [], []>} : vector<8x128xbf16>, vector<128x128xbf16>, vector<8x128xf32> -> vector<8x128xf32>
    %c0_9 = arith.constant 0 : index
    %c0_10 = arith.constant 0 : index
    %12 = vector.load %arg5[%c0_9, %c0_10] : memref<1x128xf32, #tpu.memory_space<vmem>>, vector<1x128xf32>
    %13 = vector.broadcast %12 : vector<1x128xf32> to vector<8x128xf32>
    %14 = arith.addf %11, %13 : vector<8x128xf32>
    %cst_11 = arith.constant 0.000000e+00 : f32
    %15 = vector.broadcast %cst_11 : f32 to vector<8x128xf32>
    %16 = arith.maximumf %14, %15 : vector<8x128xf32>
    %17 = arith.truncf %16 : vector<8x128xf32> to vector<8x128xbf16>
    %c0_12 = arith.constant 0 : index
    %c0_13 = arith.constant 0 : index
    %18 = vector.load %arg6[%c0_12, %c0_13] : memref<128x16xbf16, #tpu.memory_space<vmem>>, vector<128x16xbf16>
    %cst_14 = arith.constant dense<0.000000e+00> : vector<8x16xf32>
    %19 = tpu.matmul %17, %18, %cst_14 {dimension_numbers = #tpu.dot_dimension_numbers<[1], [0], [0], [1], [0, 0, 1, 1], [], []>} : vector<8x128xbf16>, vector<128x16xbf16>, vector<8x16xf32> -> vector<8x16xf32>
    %c0_15 = arith.constant 0 : index
    %c0_16 = arith.constant 0 : index
    %20 = vector.load %arg7[%c0_15, %c0_16] : memref<1x16xf32, #tpu.memory_space<vmem>>, vector<1x16xf32>
    %21 = vector.broadcast %20 : vector<1x16xf32> to vector<8x16xf32>
    %22 = arith.addf %19, %21 : vector<8x16xf32>
    %c0_17 = arith.constant 0 : index
    %c0_18 = arith.constant 0 : index
    %23 = vector.load %arg8[%c0_17, %c0_18] : memref<8x16xf32, #tpu.memory_space<vmem>>, vector<8x16xf32>
    tpu.vector_store %arg8[%c0_17, %c0_18], %22 {strides = array<i32>} : memref<8x16xf32, #tpu.memory_space<vmem>>, vector<8x16xf32>,
    return
  }
  func.func @transform_0(%arg0: i32) -> (i32, i32) {
    %c0_i32 = arith.constant 0 : i32
    %c0_i32_0 = arith.constant 0 : i32
    return %arg0, %c0_i32 : i32, i32
  }
  func.func @transform_1(%arg0: i32) -> (i32, i32) {
    %c0_i32 = arith.constant 0 : i32
    %c0_i32_0 = arith.constant 0 : i32
    %c0_i32_1 = arith.constant 0 : i32
    return %c0_i32, %c0_i32_0 : i32, i32
  }
  func.func @transform_2(%arg0: i32) -> (i32, i32) {
    %c0_i32 = arith.constant 0 : i32
    %c0_i32_0 = arith.constant 0 : i32
    %c0_i32_1 = arith.constant 0 : i32
    return %c0_i32, %c0_i32_0 : i32, i32
  }
  func.func @transform_3(%arg0: i32) -> (i32, i32) {
    %c0_i32 = arith.constant 0 : i32
    %c0_i32_0 = arith.constant 0 : i32
    %c0_i32_1 = arith.constant 0 : i32
    return %c0_i32, %c0_i32_0 : i32, i32
  }
  func.func @transform_4(%arg0: i32) -> (i32, i32) {
    %c0_i32 = arith.constant 0 : i32
    %c0_i32_0 = arith.constant 0 : i32
    %c0_i32_1 = arith.constant 0 : i32
    return %c0_i32, %c0_i32_0 : i32, i32
  }
  func.func @transform_5(%arg0: i32) -> (i32, i32) {
    %c0_i32 = arith.constant 0 : i32
    %c0_i32_0 = arith.constant 0 : i32
    %c0_i32_1 = arith.constant 0 : i32
    return %c0_i32, %c0_i32_0 : i32, i32
  }
  func.func @transform_6(%arg0: i32) -> (i32, i32) {
    %c0_i32 = arith.constant 0 : i32
    %c0_i32_0 = arith.constant 0 : i32
    %c0_i32_1 = arith.constant 0 : i32
    return %c0_i32, %c0_i32_0 : i32, i32
  }
  func.func @transform_7(%arg0: i32) -> (i32, i32) {
    %c0_i32 = arith.constant 0 : i32
    %c0_i32_0 = arith.constant 0 : i32
    return %arg0, %c0_i32 : i32, i32
  }
}

</mosaic_0001>

<llo_original>
// kernel: tpu_custom_call.1
$region0: #{tpu_custom_call.1}
  #allocation0 [shape = 'u32[]', space=smem, size = 0x4, offset = 0x4, fixed_abs, tag = 'smem constant byte address 0x4 - core index']
  #allocation1 [shape = 'u32[72,128]{1,0:T(1,128)}', space=vmem, size = 0x9000, scoped, tag = 'internal scratch']
  %s0 = inlined_call_operand.vmem [shape: f32[8,32], index: 0, kind: input, shape index: {}]
  %s1 = inlined_call_operand.hbm [shape: bf16[32,128], index: 1, kind: input, shape index: {}]
  %s2 = inlined_call_operand.vmem [shape: f32[1,128], index: 2, kind: input, shape index: {}]
  %s3 = inlined_call_operand.vmem [shape: bf16[128,128], index: 3, kind: input, shape index: {}]
  %s4 = inlined_call_operand.vmem [shape: f32[1,128], index: 4, kind: input, shape index: {}]
  %s5 = inlined_call_operand.vmem [shape: bf16[128,16], index: 5, kind: input, shape index: {}]
  %s6 = inlined_call_operand.vmem [shape: f32[1,16], index: 6, kind: input, shape index: {}]
  %s7 = inlined_call_operand.hbm [shape: f32[8,16], index: 7, kind: output, shape index: {}]
  %s8 = sld [smem:[#allocation0]]
  $region42: #{tpu_custom_call.1} parent=0
    _
  %s10 = ssub.s32 1, %s8
  %s11 = scalar_select 0, %s10, %s8
  $region1: #{tpu_custom_call.1} parent=0
    #allocation2 [shape = 'u8[8192]{0}', space=vmem, size = 0x2000, scoped, tag = 'input window, operand 1, single buffered']
    #allocation3 [shape = 's32[1]{0}', space=sflag, size = 0x4, scoped, tag = 'scoped memory for tpu_custom_call.1']
    #allocation4 [shape = 's32[1]{0}', space=sflag, size = 0x4, scoped, tag = 'scoped memory for tpu_custom_call.1']
    #allocation5 [shape = 'u8[4096]{0}', space=vmem, size = 0x1000, scoped, tag = 'output window, operand 0, single buffered']
    %12 = vsyncpa [#allocation3], 0
    %13 = vsyncpa [#allocation4], 0
    // Predicated region
    $region2: #{tpu_custom_call.1} parent=1 // pred_check
      _
    $region3: #{tpu_custom_call.1} parent=1 // pred_check_branch
      %15 = sbr.rel (0) target = $region5
    $region4: #{tpu_custom_call.1} parent=1 // pred_region
      _
    $region5: #{tpu_custom_call.1} parent=1 // pred_fallthru
      _
    // Predicated region
    $region6: #{tpu_custom_call.1} parent=1 // pred_check
      _
    $region7: #{tpu_custom_call.1} parent=1 // pred_check_branch
      %17 = sbr.rel (0) target = $region9
    $region8: #{tpu_custom_call.1} parent=1 // pred_region
      %19 = vsyncadd [#allocation3], 0
      %s20 = sshll.u32 %s1, 4
      %s21 = int_to_ptr.hbm [resolvable:$true] %s20
      %s22 = sshll.u32 [#allocation2], 4
      %s23 = int_to_ptr.vmem [resolvable:$true] %s22
      %28 = dma.hbm_to_vmem [thread:$0]  %s21, 256, %s23, [#allocation3], 64, 64, 4
    $region9: #{tpu_custom_call.1} parent=1 // pred_fallthru
      _
    // Predicated region
    $region10: #{tpu_custom_call.1} parent=1 // pred_check
      _
    $region11: #{tpu_custom_call.1} parent=1 // pred_check_branch
      %30 = sbr.rel (0) target = $region13
    $region12: #{tpu_custom_call.1} parent=1 // pred_region
      _
    $region13: #{tpu_custom_call.1} parent=1 // pred_fallthru
      _
    // Predicated region
    $region14: #{tpu_custom_call.1} parent=1 // pred_check
      _
    $region15: #{tpu_custom_call.1} parent=1 // pred_check_branch
      %32 = sbr.rel (0) target = $region17
    $region16: #{tpu_custom_call.1} parent=1 // pred_region
      _
    $region17: #{tpu_custom_call.1} parent=1 // pred_fallthru
      _
    // Predicated region
    $region18: #{tpu_custom_call.1} parent=1 // pred_check
      _
    $region19: #{tpu_custom_call.1} parent=1 // pred_check_branch
      %34 = sbr.rel (0) target = $region21
    $region20: #{tpu_custom_call.1} parent=1 // pred_region
      _
    $region21: #{tpu_custom_call.1} parent=1 // pred_fallthru
      _
    // Predicated region
    $region22: #{tpu_custom_call.1} parent=1 // pred_check
      _
    $region23: #{tpu_custom_call.1} parent=1 // pred_check_branch
      %36 = sbr.rel (0) target = $region25
    $region24: #{tpu_custom_call.1} parent=1 // pred_region
      _
    $region25: #{tpu_custom_call.1} parent=1 // pred_fallthru
      _
    // Predicated region
    $region26: #{tpu_custom_call.1} parent=1 // pred_check
      _
    $region27: #{tpu_custom_call.1} parent=1 // pred_check_branch
      %38 = sbr.rel (0) target = $region29
    $region28: #{tpu_custom_call.1} parent=1 // pred_region
      _
    $region29: #{tpu_custom_call.1} parent=1 // pred_fallthru
      _
    // Predicated region
    $region30: #{tpu_custom_call.1} parent=1 // pred_check
      _
    $region31: #{tpu_custom_call.1} parent=1 // pred_check_branch
      %40 = sbr.rel (0) target = $region33
    $region32: #{tpu_custom_call.1} parent=1 // pred_region
      %42 = dma.done [#allocation3], 256
    $region33: #{tpu_custom_call.1} parent=1 // pred_fallthru
      _
    %v44 = vld [vmem:[%s0] sm:$0xff]
    %v45 = vpack.c.bf16 %v44, %v44
    %v46 = vld [vmem:[#allocation2] sm:$0xf]
    %v47 = vld [vmem:[#allocation2 + $0x4] sm:$0xf]
    %v48 = vld [vmem:[#allocation2 + $0x8] sm:$0xf]
    %v49 = vld [vmem:[#allocation2 + $0xc] sm:$0xf]
    %v50 = vld [vmem:[%s2] sm:$0x1]
    %v52 = vperm.slane %v50, 0
    %v58 = vunpack.c.l.b16 %v46
    %v59 = vunpack.c.l.b16 %v47
    %v60 = vunpack.c.l.b16 %v48
    %v61 = vunpack.c.l.b16 %v49
    %v62 = vpack.c.b16 %v59, %v58
    %v63 = vpack.c.b16 %v61, %v60
    %vm66 = vcmask 261120
    %v68 = vsel %vm66, %v45, 0
    %70 = vmatpush.bf16.msra.mxu0 0
    %71 = vmatpush.bf16.msra.mxu0 0
    %72 = vmatpush.bf16.msra.mxu0 0
    %73 = vmatpush.bf16.msra.mxu0 0
    %74 = vmatpush.bf16.msra.mxu0 0
    %75 = vmatpush.bf16.msra.mxu0 0
    %76 = vmatpush.bf16.msra.mxu0 %v63
    %77 = vmatpush.bf16.msra.mxu0 %v62
    %78 = vmatmul.bf16.gmra.mxu0 %v68
    %v79 = vpop.f32.mrf.mxu0
    %v80 = vadd.f32 %v52, %v79
    %v81 = vpop.f32.mrf.mxu0
    %82 = vdwg.mxu0
    %v83 = vmax.f32 %v80, 0.0
    %v84 = vpack.c.bf16 %v83, %v83
    %v85 = vld [vmem:[%s3] sm:$0xf]
    %v86 = vld [vmem:[%s3 + $0x4] sm:$0xf]
    %v87 = vld [vmem:[%s3 + $0x8] sm:$0xf]
    %v88 = vld [vmem:[%s3 + $0xc] sm:$0xf]
    %v89 = vld [vmem:[%s3 + $0x10] sm:$0xf]
    %v90 = vld [vmem:[%s3 + $0x14] sm:$0xf]
    %v91 = vld [vmem:[%s3 + $0x18] sm:$0xf]
    %v92 = vld [vmem:[%s3 + $0x1c] sm:$0xf]
    %v93 = vld [vmem:[%s3 + $0x20] sm:$0xf]
    %v94 = vld [vmem:[%s3 + $0x24] sm:$0xf]
    %v95 = vld [vmem:[%s3 + $0x28] sm:$0xf]
    %v96 = vld [vmem:[%s3 + $0x2c] sm:$0xf]
    %v97 = vld [vmem:[%s3 + $0x30] sm:$0xf]
    %v98 = vld [vmem:[%s3 + $0x34] sm:$0xf]
    %v99 = vld [vmem:[%s3 + $0x38] sm:$0xf]
    %v100 = vld [vmem:[%s3 + $0x3c] sm:$0xf]
    %v101 = vld [vmem:[%s4] sm:$0x1]
    %v103 = vperm.slane %v101, 0
    %v121 = vunpack.c.l.b16 %v85
    %v122 = vunpack.c.l.b16 %v86
    %v123 = vunpack.c.l.b16 %v87
    %v124 = vunpack.c.l.b16 %v88
    %v125 = vunpack.c.l.b16 %v89
    %v126 = vunpack.c.l.b16 %v90
    %v127 = vunpack.c.l.b16 %v91
    %v128 = vunpack.c.l.b16 %v92
    %v129 = vunpack.c.l.b16 %v93
    %v130 = vunpack.c.l.b16 %v94
    %v131 = vunpack.c.l.b16 %v95
    %v132 = vunpack.c.l.b16 %v96
    %v133 = vunpack.c.l.b16 %v97
    %v134 = vunpack.c.l.b16 %v98
    %v135 = vunpack.c.l.b16 %v99
    %v136 = vunpack.c.l.b16 %v100
    %v137 = vpack.c.b16 %v122, %v121
    %v138 = vpack.c.b16 %v124, %v123
    %v139 = vpack.c.b16 %v126, %v125
    %v140 = vpack.c.b16 %v128, %v127
    %v141 = vpack.c.b16 %v130, %v129
    %v142 = vpack.c.b16 %v132, %v131
    %v143 = vpack.c.b16 %v134, %v133
    %v144 = vpack.c.b16 %v136, %v135
    %153 = vmatpush.bf16.msra.mxu0 %v144
    %154 = vmatpush.bf16.msra.mxu0 %v143
    %155 = vmatpush.bf16.msra.mxu0 %v142
    %156 = vmatpush.bf16.msra.mxu0 %v141
    %157 = vmatpush.bf16.msra.mxu0 %v140
    %158 = vmatpush.bf16.msra.mxu0 %v139
    %159 = vmatpush.bf16.msra.mxu0 %v138
    %160 = vmatpush.bf16.msra.mxu0 %v137
    %161 = vmatmul.bf16.gmra.mxu0 %v84
    %v162 = vpop.f32.mrf.mxu0
    %v163 = vadd.f32 %v103, %v162
    %v164 = vpop.f32.mrf.mxu0
    %165 = vdwg.mxu0
    %v166 = vmax.f32 %v163, 0.0
    %v167 = vpack.c.bf16 %v166, %v166
    %v168 = vld [vmem:[%s5] sm:$0xf]
    %v169 = vld [vmem:[%s5 + $0x4] sm:$0xf]
    %v170 = vld [vmem:[%s5 + $0x8] sm:$0xf]
    %v171 = vld [vmem:[%s5 + $0xc] sm:$0xf]
    %v172 = vld [vmem:[%s5 + $0x10] sm:$0xf]
    %v173 = vld [vmem:[%s5 + $0x14] sm:$0xf]
    %v174 = vld [vmem:[%s5 + $0x18] sm:$0xf]
    %v175 = vld [vmem:[%s5 + $0x1c] sm:$0xf]
    %v176 = vld [vmem:[%s5 + $0x20] sm:$0xf]
    %v177 = vld [vmem:[%s5 + $0x24] sm:$0xf]
    %v178 = vld [vmem:[%s5 + $0x28] sm:$0xf]
    %v179 = vld [vmem:[%s5 + $0x2c] sm:$0xf]
    %v180 = vld [vmem:[%s5 + $0x30] sm:$0xf]
    %v181 = vld [vmem:[%s5 + $0x34] sm:$0xf]
    %v182 = vld [vmem:[%s5 + $0x38] sm:$0xf]
    %v183 = vld [vmem:[%s5 + $0x3c] sm:$0xf]
    %v184 = vld [vmem:[%s6] sm:$0x1]
    %v186 = vperm.slane %v184, 0
    %v204 = vunpack.c.l.b16 %v168
    %v205 = vunpack.c.l.b16 %v169
    %v206 = vunpack.c.l.b16 %v170
    %v207 = vunpack.c.l.b16 %v171
    %v208 = vunpack.c.l.b16 %v172
    %v209 = vunpack.c.l.b16 %v173
    %v210 = vunpack.c.l.b16 %v174
    %v211 = vunpack.c.l.b16 %v175
    %v212 = vunpack.c.l.b16 %v176
    %v213 = vunpack.c.l.b16 %v177
    %v214 = vunpack.c.l.b16 %v178
    %v215 = vunpack.c.l.b16 %v179
    %v216 = vunpack.c.l.b16 %v180
    %v217 = vunpack.c.l.b16 %v181
    %v218 = vunpack.c.l.b16 %v182
    %v219 = vunpack.c.l.b16 %v183
    %v220 = vpack.c.b16 %v205, %v204
    %v221 = vpack.c.b16 %v207, %v206
    %v222 = vpack.c.b16 %v209, %v208
    %v223 = vpack.c.b16 %v211, %v210
    %v224 = vpack.c.b16 %v213, %v212
    %v225 = vpack.c.b16 %v215, %v214
    %v226 = vpack.c.b16 %v217, %v216
    %v227 = vpack.c.b16 %v219, %v218
    %236 = vmatpush.bf16.msra.mxu0 %v227
    %237 = vmatpush.bf16.msra.mxu0 %v226
    %238 = vmatpush.bf16.msra.mxu0 %v225
    %239 = vmatpush.bf16.msra.mxu0 %v224
    %240 = vmatpush.bf16.msra.mxu0 %v223
    %241 = vmatpush.bf16.msra.mxu0 %v222
    %242 = vmatpush.bf16.msra.mxu0 %v221
    %243 = vmatpush.bf16.msra.mxu0 %v220
    %244 = vmatmul.bf16.gmra.mxu0 %v167
    %v245 = vpop.f32.mrf.mxu0
    %v246 = vadd.f32 %v186, %v245
    %v247 = vpop.f32.mrf.mxu0
    %248 = vdwg.mxu0
    %vm249 = vcmask 130048
    %250 = vst.msk [vmem:[#allocation5] sm:$0xff] %vm249, %v246
    // Predicated region
    $region34: #{tpu_custom_call.1} parent=1 // pred_check
      _
    $region35: #{tpu_custom_call.1} parent=1 // pred_check_branch
      %252 = sbr.rel (0) target = $region37
    $region36: #{tpu_custom_call.1} parent=1 // pred_region
      %254 = vsyncadd [#allocation4], 0
      %s256 = sshll.u32 [#allocation5], 4
      %s257 = int_to_ptr.vmem [resolvable:$true] %s256
      %s258 = sshll.u32 %s7, 4
      %s259 = int_to_ptr.hbm [resolvable:$true] %s258
      %261 = dma.vmem_to_hbm [thread:$0]  %s257, 128, %s259, [#allocation4]
    $region37: #{tpu_custom_call.1} parent=1 // pred_fallthru
      _
    // Predicated region
    $region38: #{tpu_custom_call.1} parent=1 // pred_check
      _
    $region39: #{tpu_custom_call.1} parent=1 // pred_check_branch
      %263 = sbr.rel (0) target = $region41
    $region40: #{tpu_custom_call.1} parent=1 // pred_region
      %265 = dma.done [#allocation4], 128
    $region41: #{tpu_custom_call.1} parent=1 // pred_fallthru
      _
    %266 = vsyncpa [#allocation3], 1
    %267 = vsyncpa [#allocation4], 1

</llo_original>
